<compile_context>
chip_gen: v7x
topology: tpu7x:2x2x1
jax: 0.10.0
libtpu: 0.0.40
codegen_flags: <defaults>
</compile_context>

<pallas_src>
import functools

import jax
import jax.numpy as jnp
from jax.experimental import pallas as pl
from jax.experimental.pallas import tpu as pltpu


# ------------------------------- kernels ------------------------------------


def _single_block_kernel(x_ref, w_ref, o_ref, *, inv_n):
    """Whole problem in one VMEM block: gate, reduce rows, scale by 1/N."""
    gated = w_ref[...].astype(jnp.float32) * x_ref[...].astype(jnp.float32)
    o_ref[...] = jnp.sum(gated, axis=0, keepdims=True) * inv_n


def _tiled_vpu_kernel(x_ref, w_ref, o_ref, *, n_total, tile_n, needs_mask):
    """f32 path: VPU gate multiply + cross-sublane sum into resident acc."""
    i = pl.program_id(1)                 # row (reduction) axis — last/"arbitrary"
    last = pl.num_programs(1) - 1

    @pl.when(i == 0)
    def _init():
        o_ref[...] = jnp.zeros_like(o_ref)

    def _accumulate(masked):
        gated = w_ref[...].astype(jnp.float32) * x_ref[...].astype(jnp.float32)
        if masked:
            row = jax.lax.broadcasted_iota(jnp.int32, (tile_n, 1), 0) + i * tile_n
            gated = jnp.where(row < n_total, gated, 0.0)
        o_ref[...] += jnp.sum(gated, axis=0, keepdims=True)

    if needs_mask:
        # Pay the iota/compare/select only on the final (partial) tile.
        @pl.when(i < last)
        def _full():
            _accumulate(False)

        @pl.when(i == last)
        def _tail():
            _accumulate(True)
    else:
        _accumulate(False)

    @pl.when(i == last)
    def _finalize():
        o_ref[...] = o_ref[...] * (1.0 / n_total)


def _tiled_mxu_kernel(x_ref, w_ref, o_ref, *, n_total, tile_n, needs_mask):
    """bf16 path: gate+reduce fused as a (1,tile_n) x (tile_n,tile_f) matmul."""
    i = pl.program_id(1)
    last = pl.num_programs(1) - 1

    @pl.when(i == 0)
    def _init():
        o_ref[...] = jnp.zeros_like(o_ref)

    if needs_mask:
        @pl.when(i < last)
        def _full():
            o_ref[...] += jnp.dot(w_ref[...], x_ref[...],
                                  preferred_element_type=jnp.float32)

        @pl.when(i == last)
        def _tail():
            base = i * tile_n
            wv = w_ref[...]
            xv = x_ref[...]
            col = jax.lax.broadcasted_iota(jnp.int32, (1, tile_n), 1) + base
            row = jax.lax.broadcasted_iota(jnp.int32, (tile_n, 1), 0) + base
            # Mask BOTH operands: 0 * NaN-garbage in padded rows is still NaN.
            wm = jnp.where(col < n_total, wv, jnp.zeros_like(wv))
            xm = jnp.where(row < n_total, xv, jnp.zeros_like(xv))
            o_ref[...] += jnp.dot(wm, xm, preferred_element_type=jnp.float32)
    else:
        o_ref[...] += jnp.dot(w_ref[...], x_ref[...],
                              preferred_element_type=jnp.float32)

    @pl.when(i == last)
    def _finalize():
        o_ref[...] = o_ref[...] * (1.0 / n_total)


# ------------------------------- wrapper ------------------------------------

_SMALL_PROBLEM_BYTES = 4 * 1024 * 1024   # single-block fast-path threshold


def _round_up(x, m):
    return ((x + m - 1) // m) * m


@functools.lru_cache(maxsize=1)
def _vmem_config():
    """Generation-aware VMEM budgets (128 MiB v5e/v6e vs 64 MiB 2-TC v7x)."""
    try:
        cap = int(pltpu.get_tpu_info().vmem_capacity_bytes)
    except Exception:
        # Conservative, safe-everywhere fallback.
        return {"vmem_limit": 32 << 20, "stream_budget": 24 << 20,
                "multi_core": False}
    if cap <= 96 * 1024 * 1024:
        # v7x-class: 64 MiB VMEM / TC, 2 TensorCores, ~3.2 TB/s HBM -> bigger
        # tiles amortize the fixed ~0.35 us/step pipeline overhead.
        return {"vmem_limit": 48 << 20, "stream_budget": 36 << 20,
                "multi_core": True}
    # v5e/v6e-class: 128 MiB VMEM, single TensorCore (explicit limit also
    # raises v5e's 16 MiB scoped default).
    return {"vmem_limit": 64 << 20, "stream_budget": 32 << 20,
            "multi_core": False}


def _pick_tile_f(F, multi_core):
    # Split F only on multi-TensorCore (v7x) parts, where the "parallel" axis
    # can actually be sharded; on single-TC v5e/v6e a split just re-streams
    # the weights tiles and buys nothing.
    if multi_core and F >= 256 and F % 256 == 0:
        return F // 2
    return F


def _pick_tile_n(N, tile_f, itemsize, stream_budget, use_mxu):
    granule = 128 if use_mxu else 8      # lane vs sublane alignment of tile_n
    if use_mxu:
        # x double-buffered + tiny (1, tile_n) weights row (8 padded sublanes).
        per_row = 2 * tile_f * itemsize + 2 * 8 * 4
    else:
        # x double-buffered + lane-padded (tile_n, 1) weights block (1 -> 128).
        per_row = 2 * tile_f * itemsize + 2 * 128 * 4
    t = max(granule, stream_budget // per_row)
    if N <= granule:
        return N                          # one full-extent block
    t = min(t, (N // granule) * granule)  # never exceed the array extent
    return max(granule, (t // granule) * granule)


def gated_average_pool(x, weights, eps=1e-6, *, tile_n=None, tile_f=None,
                       force_grid=False):
    """Pallas implementation of GatedAveragePool.forward.

    x:       [N, F]  float32 or bfloat16
    weights: [N, 1]  (or [N]) — broadcasts over F, same as torch
    returns: [F]     == mean(weights * x, dim=0), in x.dtype
    """
    N, F = x.shape
    if weights.ndim == 1:
        weights = weights.reshape(N, 1)
    assert weights.shape == (N, 1), "weights must be [N, 1] (or [N])"

    itemsize = jnp.dtype(x.dtype).itemsize
    cfg = _vmem_config()

    # Footprint of the whole problem held in VMEM at once (w lane-padded 1->128).
    whole_bytes = N * F * itemsize + N * 128 * 4
    if not force_grid and whole_bytes <= _SMALL_PROBLEM_BYTES:
        # --------- single-block fast path: no grid, no accumulator ----------
        out = pl.pallas_call(
            functools.partial(_single_block_kernel, inv_n=1.0 / N),
            out_shape=jax.ShapeDtypeStruct((1, F), jnp.float32),
            in_specs=[
                pl.BlockSpec((N, F), lambda: (0, 0)),   # full x
                pl.BlockSpec((N, 1), lambda: (0, 0)),   # full weights
            ],
            out_specs=pl.BlockSpec((1, F), lambda: (0, 0)),
            compiler_params=pltpu.CompilerParams(
                vmem_limit_bytes=cfg["vmem_limit"]),
        )(x, weights)
        return out[0].astype(x.dtype)

    # ------------------------ tiled streaming path ---------------------------
    # bf16 streams use the MXU-fused gate+reduce (exact: bf16xbf16 products
    # accumulate in f32); f32 streams keep the full-precision VPU path.
    use_mxu = (x.dtype == jnp.bfloat16)

    if tile_f is None:
        tile_f = _pick_tile_f(F, cfg["multi_core"])
    assert F % tile_f == 0 and (tile_f % 128 == 0 or tile_f == F), \
        "tile_f must divide F and be a multiple of 128 (or equal F)"

    granule = 128 if use_mxu else 8
    if tile_n is None:
        tile_n = _pick_tile_n(N, tile_f, itemsize, cfg["stream_budget"], use_mxu)
    assert tile_n == N or tile_n % granule == 0, \
        f"row tile must be a multiple of {granule} (or equal N)"

    n_row_blocks = pl.cdiv(N, tile_n)
    needs_mask = (N % tile_n) != 0

    if use_mxu:
        w_in = weights.reshape(1, N).astype(x.dtype)     # lane-major weights row
        w_spec = pl.BlockSpec((1, tile_n), lambda j, i: (0, i))
        kernel = functools.partial(_tiled_mxu_kernel, n_total=N,
                                   tile_n=tile_n, needs_mask=needs_mask)
    else:
        w_in = weights.astype(jnp.float32)
        w_spec = pl.BlockSpec((tile_n, 1), lambda j, i: (i, 0))
        kernel = functools.partial(_tiled_vpu_kernel, n_total=N,
                                   tile_n=tile_n, needs_mask=needs_mask)

    # Possible v7x-only follow-ups deliberately left out pending profiling:
    # pl.Buffered(3) on the x stream, and a cross-TensorCore split of the
    # reduction axis when F < 256 (only helps if one TC can't saturate HBM).
    out = pl.pallas_call(
        kernel,
        out_shape=jax.ShapeDtypeStruct((1, F), jnp.float32),
        grid_spec=pltpu.PrefetchScalarGridSpec(
            num_scalar_prefetch=0,
            grid=(F // tile_f, n_row_blocks),            # reduction axis LAST
            in_specs=[
                pl.BlockSpec((tile_n, tile_f), lambda j, i: (i, j)),  # x tile
                w_spec,                                               # weights
            ],
            out_specs=pl.BlockSpec((1, tile_f), lambda j, i: (0, j)),  # resident acc
        ),
        compiler_params=pltpu.CompilerParams(
            # reduction axis "arbitrary" (accumulate-into-output); F axis
            # "parallel" so a 2-TC v7x can shard the feature blocks.
            dimension_semantics=("parallel", "arbitrary"),
            vmem_limit_bytes=cfg["vmem_limit"],
        ),
    )(x, w_in)
    return out[0].astype(x.dtype)


if __name__ == "__main__":
    key = jax.random.PRNGKey(0)
    kx, kw, kx2, kw2 = jax.random.split(key, 4)

    # --- 1) small f32 problem: grid-free single-block fast path --------------
    N, F = 64, 128
    x = jax.random.normal(kx, (N, F), dtype=jnp.float32)
    weights = jax.random.uniform(kw, (N, 1), dtype=jnp.float32)

    out = jax.block_until_ready(gated_average_pool(x, weights))
    ref = jnp.mean(weights * x, axis=0)
    assert out.shape == (F,)
    assert jnp.allclose(out, ref, atol=1e-5, rtol=1e-5), "fast-path mismatch"

    # --- 2) f32 tiled VPU path: non-divisible N -> mask on final step only ---
    N2, F2 = 200, 256
    x2 = jax.random.normal(kx2, (N2, F2), dtype=jnp.float32)
    w2 = jax.random.uniform(kw2, (N2, 1), dtype=jnp.float32)

    out2 = jax.block_until_ready(
        gated_average_pool(x2, w2, tile_n=64, force_grid=True))
    ref2 = jnp.mean(w2 * x2, axis=0)
    assert out2.shape == (F2,)
    assert jnp.allclose(out2, ref2, atol=1e-5, rtol=1e-5), "VPU-path mismatch"

    # --- 3) bf16 tiled MXU-fused path (gate+reduce as one matmul) ------------
    x3 = x2.astype(jnp.bfloat16)
    w3 = w2.astype(jnp.bfloat16)
    out3 = jax.block_until_ready(
        gated_average_pool(x3, w3, tile_n=128, force_grid=True))
    ref3 = jnp.mean(w3.astype(jnp.float32) * x3.astype(jnp.float32), axis=0)
    assert out3.shape == (F2,) and out3.dtype == jnp.bfloat16
    assert jnp.allclose(out3.astype(jnp.float32), ref3,
                        atol=1e-2, rtol=1e-2), "MXU-path mismatch"

    print("KERNEL_OK")
</pallas_src>

<mosaic_0001>
module attributes {stable_mosaic.version = 11 : i64} {
  func.func @_single_block_kernel(%arg0: memref<64x128xf32, #tpu.memory_space<vmem>>, %arg1: memref<64x1xf32, #tpu.memory_space<vmem>>, %arg2: memref<1x128xf32, #tpu.memory_space<vmem>>) attributes {dimension_semantics = [], scalar_prefetch = 0 : i64, scratch_operands = 0 : i64, tpu.core_type = #tpu.core_type<tc>} {
    %c0 = arith.constant 0 : index
    %c0_0 = arith.constant 0 : index
    %0 = vector.load %arg1[%c0, %c0_0] : memref<64x1xf32, #tpu.memory_space<vmem>>, vector<64x1xf32>
    %c0_1 = arith.constant 0 : index
    %c0_2 = arith.constant 0 : index
    %1 = vector.load %arg0[%c0_1, %c0_2] : memref<64x128xf32, #tpu.memory_space<vmem>>, vector<64x128xf32>
    %2 = vector.broadcast %0 : vector<64x1xf32> to vector<64x128xf32>
    %3 = arith.mulf %2, %1 : vector<64x128xf32>
    %cst = arith.constant dense<0.000000e+00> : vector<128xf32>
    %4 = vector.multi_reduction <add>, %3, %cst [0] : vector<64x128xf32> to vector<128xf32>
    %5 = vector.shape_cast %4 : vector<128xf32> to vector<1x128xf32>
    %cst_3 = arith.constant 1.562500e-02 : f32
    %6 = vector.broadcast %cst_3 : f32 to vector<1x128xf32>
    %7 = arith.mulf %5, %6 : vector<1x128xf32>
    %c0_4 = arith.constant 0 : index
    %c0_5 = arith.constant 0 : index
    %8 = vector.load %arg2[%c0_4, %c0_5] : memref<1x128xf32, #tpu.memory_space<vmem>>, vector<1x128xf32>
    tpu.vector_store %arg2[%c0_4, %c0_5], %7 {strides = array<i32>} : memref<1x128xf32, #tpu.memory_space<vmem>>, vector<1x128xf32>,
    return
  }
}

</mosaic_0001>

<llo_original>
// kernel: tpu_custom_call.1
$region0: #{tpu_custom_call.1}
  #allocation0 [shape = 'u32[]', space=smem, size = 0x4, offset = 0x4, fixed_abs, tag = 'smem constant byte address 0x4 - core index']
  #allocation1 [shape = 'u32[144,128]{1,0:T(1,128)}', space=vmem, size = 0x12000, scoped, tag = 'internal scratch']
  %s0 = inlined_call_operand.vmem [shape: f32[64,128], index: 0, kind: input, shape index: {}]
  %s1 = inlined_call_operand.vmem [shape: f32[64,1], index: 1, kind: input, shape index: {}]
  %s2 = inlined_call_operand.hbm [shape: f32[1,128], index: 2, kind: output, shape index: {}]
  %s3 = sld [smem:[#allocation0]]
  $region18: #{tpu_custom_call.1} parent=0
    _
  %s5 = ssub.s32 1, %s3
  %s6 = scalar_select 0, %s5, %s3
  $region1: #{tpu_custom_call.1} parent=0
    #allocation2 [shape = 'u8[512]{0}', space=vmem, size = 0x400, scoped, tag = 'output window, operand 0, single buffered']
    #allocation3 [shape = 's32[1]{0}', space=sflag, size = 0x4, scoped, tag = 'scoped memory for tpu_custom_call.1']
    %7 = vsyncpa [#allocation3], 0
    // Predicated region
    $region2: #{tpu_custom_call.1} parent=1 // pred_check
      _
    $region3: #{tpu_custom_call.1} parent=1 // pred_check_branch
      %9 = sbr.rel (0) target = $region5
    $region4: #{tpu_custom_call.1} parent=1 // pred_region
      _
    $region5: #{tpu_custom_call.1} parent=1 // pred_fallthru
      _
    // Predicated region
    $region6: #{tpu_custom_call.1} parent=1 // pred_check
      _
    $region7: #{tpu_custom_call.1} parent=1 // pred_check_branch
      %11 = sbr.rel (0) target = $region9
    $region8: #{tpu_custom_call.1} parent=1 // pred_region
      _
    $region9: #{tpu_custom_call.1} parent=1 // pred_fallthru
      _
    %v12 = vld [vmem:[%s1] sm:$0xff]
    %v13 = vld [vmem:[%s1 + $0x8] sm:$0xff]
    %v14 = vld [vmem:[%s1 + $0x10] sm:$0xff]
    %v15 = vld [vmem:[%s1 + $0x18] sm:$0xff]
    %v16 = vld [vmem:[%s1 + $0x20] sm:$0xff]
    %v17 = vld [vmem:[%s1 + $0x28] sm:$0xff]
    %v18 = vld [vmem:[%s1 + $0x30] sm:$0xff]
    %v19 = vld [vmem:[%s1 + $0x38] sm:$0xff]
    %v20 = vld [vmem:[%s0] sm:$0xff]
    %v21 = vld [vmem:[%s0 + $0x8] sm:$0xff]
    %v22 = vld [vmem:[%s0 + $0x10] sm:$0xff]
    %v23 = vld [vmem:[%s0 + $0x18] sm:$0xff]
    %v24 = vld [vmem:[%s0 + $0x20] sm:$0xff]
    %v25 = vld [vmem:[%s0 + $0x28] sm:$0xff]
    %v26 = vld [vmem:[%s0 + $0x30] sm:$0xff]
    %v27 = vld [vmem:[%s0 + $0x38] sm:$0xff]
    %29 = vset.pattern.permute.xlu0 0
    %30 = vperm.xlu0 %29, %v12
    %v31 = vpop.permute.xlu0 %30
    %34 = vset.pattern.permute.xlu0 0
    %35 = vperm.xlu0 %34, %v13
    %v36 = vpop.permute.xlu0 %35
    %39 = vset.pattern.permute.xlu0 0
    %40 = vperm.xlu0 %39, %v14
    %v41 = vpop.permute.xlu0 %40
    %44 = vset.pattern.permute.xlu0 0
    %45 = vperm.xlu0 %44, %v15
    %v46 = vpop.permute.xlu0 %45
    %49 = vset.pattern.permute.xlu0 0
    %50 = vperm.xlu0 %49, %v16
    %v51 = vpop.permute.xlu0 %50
    %54 = vset.pattern.permute.xlu0 0
    %55 = vperm.xlu0 %54, %v17
    %v56 = vpop.permute.xlu0 %55
    %59 = vset.pattern.permute.xlu0 0
    %60 = vperm.xlu0 %59, %v18
    %v61 = vpop.permute.xlu0 %60
    %64 = vset.pattern.permute.xlu0 0
    %65 = vperm.xlu0 %64, %v19
    %v66 = vpop.permute.xlu0 %65
    %v68 = vmul.f32 %v31, %v20
    %v69 = vmul.f32 %v36, %v21
    %v70 = vmul.f32 %v41, %v22
    %v71 = vmul.f32 %v46, %v23
    %v72 = vmul.f32 %v51, %v24
    %v73 = vmul.f32 %v56, %v25
    %v74 = vmul.f32 %v61, %v26
    %v75 = vmul.f32 %v66, %v27
    %v76 = vadd.f32 %v68, %v69
    %v77 = vadd.f32 %v76, %v70
    %v78 = vadd.f32 %v77, %v71
    %v79 = vadd.f32 %v78, %v72
    %v80 = vadd.f32 %v79, %v73
    %v81 = vadd.f32 %v80, %v74
    %v82 = vadd.f32 %v81, %v75
    %v83 = vrot.slane %v82, 4
    %v84 = vadd.f32 %v82, %v83
    %v85 = vrot.slane %v84, 2
    %v86 = vadd.f32 %v84, %v85
    %v87 = vrot.slane %v86, 1
    %v88 = vadd.f32 %v86, %v87
    %v89 = vmul.f32 %v88, 0.015625
    %90 = vst [vmem:[#allocation2] sm:$0x1] %v89
    // Predicated region
    $region10: #{tpu_custom_call.1} parent=1 // pred_check
      _
    $region11: #{tpu_custom_call.1} parent=1 // pred_check_branch
      %92 = sbr.rel (0) target = $region13
    $region12: #{tpu_custom_call.1} parent=1 // pred_region
      %s94 = ssub.s32 16, 16
      %95 = vsyncadd [#allocation3], %s94
      %s97 = sshll.u32 [#allocation2], 4
      %s98 = int_to_ptr.vmem [resolvable:$true] %s97
      %100 = dma.vmem_to_hbm [thread:$0]  %s98, 16, %s2, [#allocation3]
    $region13: #{tpu_custom_call.1} parent=1 // pred_fallthru
      _
    // Predicated region
    $region14: #{tpu_custom_call.1} parent=1 // pred_check
      _
    $region15: #{tpu_custom_call.1} parent=1 // pred_check_branch
      %102 = sbr.rel (0) target = $region17
    $region16: #{tpu_custom_call.1} parent=1 // pred_region
      %103 = dma.done [#allocation3], 16
    $region17: #{tpu_custom_call.1} parent=1 // pred_fallthru
      _
    %104 = vsyncpa [#allocation3], 1

</llo_original>
